<compile_context>
chip_gen: v5e
topology: v5e:2x2
jax: 0.10.0
libtpu: 0.0.40
codegen_flags: <defaults>
</compile_context>

<pallas_src>
import jax
import jax.numpy as jnp
from jax.experimental import pallas as pl
from jax.experimental.pallas import tpu as pltpu


# ---------------------------------------------------------------------------
# Fused kernel: (implicit concat) -> Linear(26,16) -> ReLU -> Linear(16,13)
#               -> Softmax(dim=1), stored directly as an exact (bt, 13) block.
# ---------------------------------------------------------------------------
def _combined_head_kernel(txt_ref, img_ref, w1t_ref, w1i_ref, b1_ref,
                          w2_ref, b2_ref, o_ref):
    # txt_ref: (bt, Dt) text features; img_ref: (bt, Di) image features
    # w1t_ref: (Dt, H); w1i_ref: (Di, H); b1_ref: (1, H)
    # w2_ref:  (H, C);  b2_ref: (1, C);  o_ref: (bt, C)
    # torch.cat((text, image), dim=1) @ W1 == text @ W1[:Dt] + image @ W1[Dt:]
    h = jnp.dot(txt_ref[...], w1t_ref[...], preferred_element_type=jnp.float32)
    h = h + jnp.dot(img_ref[...], w1i_ref[...],
                    preferred_element_type=jnp.float32)
    h = jnp.maximum(h + b1_ref[...], 0.0)                        # ReLU
    logits = jnp.dot(h, w2_ref[...],
                     preferred_element_type=jnp.float32) + b2_ref[...]
    # Softmax over the class axis (torch nn.Softmax() on 2-D input == dim=1).
    m = jnp.max(logits, axis=-1, keepdims=True)
    e = jnp.exp(logits - m)
    o_ref[...] = (e / jnp.sum(e, axis=-1, keepdims=True)).astype(o_ref.dtype)


# ---------------------------------------------------------------------------
# One-time weight preparation (hoisted out of the per-call path).
# ---------------------------------------------------------------------------
def prepare_params(params, d_text):
    """Split/reshape the classifier weights once; pass the result to forward."""
    w1, b1, w2, b2 = params["w1"], params["b1"], params["w2"], params["b2"]
    H = w1.shape[1]
    C = w2.shape[1]
    return {
        "w1t": w1[:d_text],          # (Dt, H) rows acting on the text features
        "w1i": w1[d_text:],          # (Di, H) rows acting on the image features
        "b1": b1.reshape(1, H),
        "w2": w2,                    # (H, C)
        "b2": b2.reshape(1, C),
    }


def _choose_block_rows(n, block_n):
    """Batch-tile rows.  Single step for small N; >=2 parallel steps (v7x has
    2 TensorCores) for N > 256, capped at block_n; always a multiple of 8 when
    it is not the full batch (Pallas (8,128) block constraint)."""
    if n <= 256:
        return n                                   # one grid step
    half = (((n + 1) // 2) + 7) // 8 * 8           # round_up(cdiv(n, 2), 8)
    return min(block_n, half)


# ---------------------------------------------------------------------------
# Wrapper mirroring CombinedModel.forward / .predict
# ---------------------------------------------------------------------------
def combined_model_forward(image_features, text_features, prepped, *,
                           block_n=1024):
    """image_features: (N, Di); text_features: (N, Dt); returns (N, C) probs."""
    N, Dt = text_features.shape
    Ni, Di = image_features.shape
    assert N == Ni
    w1t, w1i, b1 = prepped["w1t"], prepped["w1i"], prepped["b1"]
    w2, b2 = prepped["w2"], prepped["b2"]
    H = w1t.shape[1]
    C = w2.shape[1]
    assert w1t.shape[0] == Dt and w1i.shape[0] == Di

    bt = _choose_block_rows(N, block_n)
    grid = (pl.cdiv(N, bt),)   # ragged last block handled by Pallas masking

    # At these tile sizes VMEM use is tiny (<1 MiB double-buffered), so the
    # default scoped-VMEM limit is fine on all of v5e / v6e / v7x.
    return pl.pallas_call(
        _combined_head_kernel,
        out_shape=jax.ShapeDtypeStruct((N, C), jnp.float32),
        grid=grid,
        in_specs=[
            pl.BlockSpec((bt, Dt), lambda i: (i, 0)),
            pl.BlockSpec((bt, Di), lambda i: (i, 0)),
            pl.BlockSpec((Dt, H), lambda i: (0, 0)),   # grid-invariant weights
            pl.BlockSpec((Di, H), lambda i: (0, 0)),   # stay resident in VMEM
            pl.BlockSpec((1, H), lambda i: (0, 0)),
            pl.BlockSpec((H, C), lambda i: (0, 0)),
            pl.BlockSpec((1, C), lambda i: (0, 0)),
        ],
        # Block spans the full 13-wide minor dim -> contiguous writeback DMA.
        out_specs=pl.BlockSpec((bt, C), lambda i: (i, 0)),
        compiler_params=pltpu.CompilerParams(
            dimension_semantics=("parallel",)),
    )(text_features, image_features, w1t, w1i, b1, w2, b2)


def combined_model_predict(image_features, text_features, prepped):
    # torch.no_grad() needs no JAX analogue for pure inference.
    return combined_model_forward(image_features, text_features, prepped)


# ---------------------------------------------------------------------------
# Deterministic parameter init (shapes from CombinedModel.__init__)
# ---------------------------------------------------------------------------
def init_params(key, in_text=13, in_image=13, hidden=16, num_classes=13):
    d_in = in_text + in_image                        # 26 (Linear(26, 16))
    k1, k2, k3, k4 = jax.random.split(key, 4)
    # PyTorch nn.Linear stores (out, in); we store (in, out).
    w1 = jax.random.normal(k1, (hidden, d_in), jnp.float32) * 0.1
    b1 = jax.random.normal(k2, (hidden,), jnp.float32) * 0.1
    w2 = jax.random.normal(k3, (num_classes, hidden), jnp.float32) * 0.1
    b2 = jax.random.normal(k4, (num_classes,), jnp.float32) * 0.1
    return {"w1": w1.T, "b1": b1, "w2": w2.T, "b2": b2}


def _reference_forward(image_features, text_features, params):
    """Pure-JAX reference matching CombinedModel.forward (classifier head)."""
    x = jnp.concatenate([text_features, image_features], axis=1)
    h = jnp.maximum(x @ params["w1"] + params["b1"], 0.0)
    return jax.nn.softmax(h @ params["w2"] + params["b2"], axis=-1)


if __name__ == "__main__":
    # Small deterministic example: 13 text + 13 image features (so the
    # concatenated vector is 26-wide, matching Linear(26, 16)), 13 classes.
    D_TXT, D_IMG, HIDDEN, NUM_CLASSES = 13, 13, 16, 13

    key = jax.random.PRNGKey(0)
    k_t1, k_i1, k_t2, k_i2, k_p = jax.random.split(key, 5)
    params = init_params(k_p, D_TXT, D_IMG, HIDDEN, NUM_CLASSES)
    prepped = prepare_params(params, D_TXT)          # one-time weight prep

    fwd = jax.jit(combined_model_forward)

    # Case 1: tiny batch (single grid step).
    N1 = 2
    text1 = jax.random.normal(k_t1, (N1, D_TXT), jnp.float32)
    image1 = jax.random.normal(k_i1, (N1, D_IMG), jnp.float32)
    probs1 = jax.block_until_ready(fwd(image1, text1, prepped))
    assert probs1.shape == (N1, NUM_CLASSES), probs1.shape
    assert probs1.dtype == jnp.float32
    ref1 = _reference_forward(image1, text1, params)
    assert bool(jnp.allclose(probs1, ref1, atol=1e-5))
    assert bool(jnp.allclose(jnp.sum(probs1, axis=-1), 1.0, atol=1e-5))

    # Case 2: multi-step parallel grid (2 steps -> both v7x TCs) with a ragged
    # last block (300 rows -> bt=152, blocks of 152 and 148 rows).
    N2 = 300
    text2 = jax.random.normal(k_t2, (N2, D_TXT), jnp.float32)
    image2 = jax.random.normal(k_i2, (N2, D_IMG), jnp.float32)
    probs2 = jax.block_until_ready(fwd(image2, text2, prepped))
    assert probs2.shape == (N2, NUM_CLASSES), probs2.shape
    ref2 = _reference_forward(image2, text2, params)
    assert bool(jnp.allclose(probs2, ref2, atol=1e-5))
    assert bool(jnp.allclose(jnp.sum(probs2, axis=-1), 1.0, atol=1e-5))

    # TODO(synk): predict_proba relies on an external `calc_prob` and
    # predict_classes on the injected `decoder` dict; neither is defined in
    # the reference module, so only forward/predict semantics are implemented.
    print("KERNEL_OK")
</pallas_src>

<mosaic_0001>
module attributes {stable_mosaic.version = 11 : i64} {
  func.func @_combined_head_kernel(%arg0: i32, %arg1: memref<2x13xf32, #tpu.memory_space<vmem>>, %arg2: memref<2x13xf32, #tpu.memory_space<vmem>>, %arg3: memref<13x16xf32, #tpu.memory_space<vmem>>, %arg4: memref<13x16xf32, #tpu.memory_space<vmem>>, %arg5: memref<1x16xf32, #tpu.memory_space<vmem>>, %arg6: memref<16x13xf32, #tpu.memory_space<vmem>>, %arg7: memref<1x13xf32, #tpu.memory_space<vmem>>, %arg8: memref<2x13xf32, #tpu.memory_space<vmem>>) attributes {dimension_semantics = [#tpu.dimension_semantics<parallel>], iteration_bounds = array<i64: 1>, scalar_prefetch = 0 : i64, scratch_operands = 0 : i64, tpu.core_type = #tpu.core_type<tc>, window_params = [{transform_indices = @transform_0, window_bounds = array<i64: 2, 13>}, {transform_indices = @transform_1, window_bounds = array<i64: 2, 13>}, {pipeline_mode = #tpu.pipeline_mode<synchronous>, transform_indices = @transform_2, window_bounds = array<i64: 13, 16>}, {pipeline_mode = #tpu.pipeline_mode<synchronous>, transform_indices = @transform_3, window_bounds = array<i64: 13, 16>}, {pipeline_mode = #tpu.pipeline_mode<synchronous>, transform_indices = @transform_4, window_bounds = array<i64: 1, 16>}, {pipeline_mode = #tpu.pipeline_mode<synchronous>, transform_indices = @transform_5, window_bounds = array<i64: 16, 13>}, {pipeline_mode = #tpu.pipeline_mode<synchronous>, transform_indices = @transform_6, window_bounds = array<i64: 1, 13>}, {transform_indices = @transform_7, window_bounds = array<i64: 2, 13>}]} {
    %c0 = arith.constant 0 : index
    %c0_0 = arith.constant 0 : index
    %0 = vector.load %arg1[%c0, %c0_0] : memref<2x13xf32, #tpu.memory_space<vmem>>, vector<2x13xf32>
    %c0_1 = arith.constant 0 : index
    %c0_2 = arith.constant 0 : index
    %1 = vector.load %arg3[%c0_1, %c0_2] : memref<13x16xf32, #tpu.memory_space<vmem>>, vector<13x16xf32>
    %cst = arith.constant dense<0.000000e+00> : vector<2x16xf32>
    %2 = tpu.matmul %0, %1, %cst {dimension_numbers = #tpu.dot_dimension_numbers<[1], [0], [0], [1], [0, 0, 1, 1], [], []>} : vector<2x13xf32>, vector<13x16xf32>, vector<2x16xf32> -> vector<2x16xf32>
    %c0_3 = arith.constant 0 : index
    %c0_4 = arith.constant 0 : index
    %3 = vector.load %arg2[%c0_3, %c0_4] : memref<2x13xf32, #tpu.memory_space<vmem>>, vector<2x13xf32>
    %c0_5 = arith.constant 0 : index
    %c0_6 = arith.constant 0 : index
    %4 = vector.load %arg4[%c0_5, %c0_6] : memref<13x16xf32, #tpu.memory_space<vmem>>, vector<13x16xf32>
    %cst_7 = arith.constant dense<0.000000e+00> : vector<2x16xf32>
    %5 = tpu.matmul %3, %4, %cst_7 {dimension_numbers = #tpu.dot_dimension_numbers<[1], [0], [0], [1], [0, 0, 1, 1], [], []>} : vector<2x13xf32>, vector<13x16xf32>, vector<2x16xf32> -> vector<2x16xf32>
    %6 = arith.addf %2, %5 : vector<2x16xf32>
    %c0_8 = arith.constant 0 : index
    %c0_9 = arith.constant 0 : index
    %7 = vector.load %arg5[%c0_8, %c0_9] : memref<1x16xf32, #tpu.memory_space<vmem>>, vector<1x16xf32>
    %8 = vector.broadcast %7 : vector<1x16xf32> to vector<2x16xf32>
    %9 = arith.addf %6, %8 : vector<2x16xf32>
    %cst_10 = arith.constant 0.000000e+00 : f32
    %10 = vector.broadcast %cst_10 : f32 to vector<2x16xf32>
    %11 = arith.maximumf %9, %10 : vector<2x16xf32>
    %c0_11 = arith.constant 0 : index
    %c0_12 = arith.constant 0 : index
    %12 = vector.load %arg6[%c0_11, %c0_12] : memref<16x13xf32, #tpu.memory_space<vmem>>, vector<16x13xf32>
    %cst_13 = arith.constant dense<0.000000e+00> : vector<2x13xf32>
    %13 = tpu.matmul %11, %12, %cst_13 {dimension_numbers = #tpu.dot_dimension_numbers<[1], [0], [0], [1], [0, 0, 1, 1], [], []>} : vector<2x16xf32>, vector<16x13xf32>, vector<2x13xf32> -> vector<2x13xf32>
    %c0_14 = arith.constant 0 : index
    %c0_15 = arith.constant 0 : index
    %14 = vector.load %arg7[%c0_14, %c0_15] : memref<1x13xf32, #tpu.memory_space<vmem>>, vector<1x13xf32>
    %15 = vector.broadcast %14 : vector<1x13xf32> to vector<2x13xf32>
    %16 = arith.addf %13, %15 : vector<2x13xf32>
    %cst_16 = arith.constant dense<0xFF800000> : vector<2xf32>
    %17 = vector.multi_reduction <maximumf>, %16, %cst_16 [1] : vector<2x13xf32> to vector<2xf32>
    %18 = vector.shape_cast %17 : vector<2xf32> to vector<2x1xf32>
    %19 = vector.broadcast %18 : vector<2x1xf32> to vector<2x13xf32>
    %20 = arith.subf %16, %19 : vector<2x13xf32>
    %21 = math.exp %20 : vector<2x13xf32>
    %cst_17 = arith.constant dense<0.000000e+00> : vector<2xf32>
    %22 = vector.multi_reduction <add>, %21, %cst_17 [1] : vector<2x13xf32> to vector<2xf32>
    %23 = vector.shape_cast %22 : vector<2xf32> to vector<2x1xf32>
    %24 = vector.broadcast %23 : vector<2x1xf32> to vector<2x13xf32>
    %25 = arith.divf %21, %24 : vector<2x13xf32>
    %c0_18 = arith.constant 0 : index
    %c0_19 = arith.constant 0 : index
    %26 = vector.load %arg8[%c0_18, %c0_19] : memref<2x13xf32, #tpu.memory_space<vmem>>, vector<2x13xf32>
    tpu.vector_store %arg8[%c0_18, %c0_19], %25 {strides = array<i32>} : memref<2x13xf32, #tpu.memory_space<vmem>>, vector<2x13xf32>,
    return
  }
  func.func @transform_0(%arg0: i32) -> (i32, i32) {
    %c0_i32 = arith.constant 0 : i32
    %c0_i32_0 = arith.constant 0 : i32
    return %arg0, %c0_i32 : i32, i32
  }
  func.func @transform_1(%arg0: i32) -> (i32, i32) {
    %c0_i32 = arith.constant 0 : i32
    %c0_i32_0 = arith.constant 0 : i32
    return %arg0, %c0_i32 : i32, i32
  }
  func.func @transform_2(%arg0: i32) -> (i32, i32) {
    %c0_i32 = arith.constant 0 : i32
    %c0_i32_0 = arith.constant 0 : i32
    %c0_i32_1 = arith.constant 0 : i32
    return %c0_i32, %c0_i32_0 : i32, i32
  }
  func.func @transform_3(%arg0: i32) -> (i32, i32) {
    %c0_i32 = arith.constant 0 : i32
    %c0_i32_0 = arith.constant 0 : i32
    %c0_i32_1 = arith.constant 0 : i32
    return %c0_i32, %c0_i32_0 : i32, i32
  }
  func.func @transform_4(%arg0: i32) -> (i32, i32) {
    %c0_i32 = arith.constant 0 : i32
    %c0_i32_0 = arith.constant 0 : i32
    %c0_i32_1 = arith.constant 0 : i32
    return %c0_i32, %c0_i32_0 : i32, i32
  }
  func.func @transform_5(%arg0: i32) -> (i32, i32) {
    %c0_i32 = arith.constant 0 : i32
    %c0_i32_0 = arith.constant 0 : i32
    %c0_i32_1 = arith.constant 0 : i32
    return %c0_i32, %c0_i32_0 : i32, i32
  }
  func.func @transform_6(%arg0: i32) -> (i32, i32) {
    %c0_i32 = arith.constant 0 : i32
    %c0_i32_0 = arith.constant 0 : i32
    %c0_i32_1 = arith.constant 0 : i32
    return %c0_i32, %c0_i32_0 : i32, i32
  }
  func.func @transform_7(%arg0: i32) -> (i32, i32) {
    %c0_i32 = arith.constant 0 : i32
    %c0_i32_0 = arith.constant 0 : i32
    return %arg0, %c0_i32 : i32, i32
  }
}

</mosaic_0001>

<llo_original>
// kernel: combined_model_forward.1
$region0: #{combined_model_forward.1}
  #allocation0 [shape = 'u32[]', space=smem, size = 0x4, offset = 0x4, fixed_abs, tag = 'smem constant byte address 0x4 - core index']
  #allocation1 [shape = 'u32[72,128]{1,0:T(1,128)}', space=vmem, size = 0x9000, scoped, tag = 'internal scratch']
  %s0 = inlined_call_operand.hbm [shape: f32[2,13], index: 0, kind: input, shape index: {}]
  %s1 = inlined_call_operand.hbm [shape: f32[2,13], index: 1, kind: input, shape index: {}]
  %s2 = inlined_call_operand.hbm [shape: f32[13,16], index: 2, kind: input, shape index: {}]
  %s3 = inlined_call_operand.hbm [shape: f32[13,16], index: 3, kind: input, shape index: {}]
  %s4 = inlined_call_operand.vmem [shape: f32[1,16], index: 4, kind: input, shape index: {}]
  %s5 = inlined_call_operand.hbm [shape: f32[16,13], index: 5, kind: input, shape index: {}]
  %s6 = inlined_call_operand.vmem [shape: f32[1,13], index: 6, kind: input, shape index: {}]
  %s7 = inlined_call_operand.hbm [shape: f32[2,13], index: 7, kind: output, shape index: {}]
  %s8 = sld [smem:[#allocation0]]
  $region58: #{combined_model_forward.1} parent=0
    _
  %s10 = ssub.s32 1, %s8
  %s11 = scalar_select 0, %s10, %s8
  $region1: #{combined_model_forward.1} parent=0
    #allocation2 [shape = 'u8[1024]{0}', space=vmem, size = 0x400, scoped, tag = 'input window, operand 0, single buffered']
    #allocation3 [shape = 's32[1]{0}', space=sflag, size = 0x4, scoped, tag = 'scoped memory for combined_model_forward.1']
    #allocation4 [shape = 's32[1]{0}', space=sflag, size = 0x4, scoped, tag = 'scoped memory for combined_model_forward.1']
    #allocation5 [shape = 'u8[1024]{0}', space=vmem, size = 0x400, scoped, tag = 'input window, operand 1, single buffered']
    #allocation6 [shape = 's32[1]{0}', space=sflag, size = 0x4, scoped, tag = 'scoped memory for combined_model_forward.1']
    #allocation7 [shape = 'u8[8192]{0}', space=vmem, size = 0x2000, scoped, tag = 'input window, operand 2, single buffered']
    #allocation8 [shape = 'u8[8192]{0}', space=vmem, size = 0x2000, scoped, tag = 'input window, operand 3, single buffered']
    #allocation9 [shape = 's32[1]{0}', space=sflag, size = 0x4, scoped, tag = 'scoped memory for combined_model_forward.1']
    #allocation10 [shape = 'u8[8192]{0}', space=vmem, size = 0x2000, scoped, tag = 'input window, operand 5, single buffered']
    #allocation11 [shape = 'u8[1024]{0}', space=vmem, size = 0x400, scoped, tag = 'output window, operand 0, single buffered']
    %12 = vsyncpa [#allocation3], 0
    %13 = vsyncpa [#allocation6], 0
    %14 = vsyncpa [#allocation9], 0
    %15 = vsyncpa [#allocation4], 0
    // Predicated region
    $region2: #{combined_model_forward.1} parent=1 // pred_check
      _
    $region3: #{combined_model_forward.1} parent=1 // pred_check_branch
      %17 = sbr.rel (0) target = $region5
    $region4: #{combined_model_forward.1} parent=1 // pred_region
      %19 = vsyncadd [#allocation3], 0
      %s21 = sshll.u32 %s0, 4
      %s22 = int_to_ptr.hbm [resolvable:$true] %s21
      %s23 = sshll.u32 [#allocation2], 4
      %s24 = int_to_ptr.vmem [resolvable:$true] %s23
      %26 = dma.hbm_to_vmem [thread:$0]  %s22, 32, %s24, [#allocation3]
    $region5: #{combined_model_forward.1} parent=1 // pred_fallthru
      _
    // Predicated region
    $region6: #{combined_model_forward.1} parent=1 // pred_check
      _
    $region7: #{combined_model_forward.1} parent=1 // pred_check_branch
      %28 = sbr.rel (0) target = $region9
    $region8: #{combined_model_forward.1} parent=1 // pred_region
      %30 = vsyncadd [#allocation6], 0
      %s32 = sshll.u32 %s1, 4
      %s33 = int_to_ptr.hbm [resolvable:$true] %s32
      %s34 = sshll.u32 [#allocation5], 4
      %s35 = int_to_ptr.vmem [resolvable:$true] %s34
      %37 = dma.hbm_to_vmem [thread:$0]  %s33, 32, %s35, [#allocation6]
    $region9: #{combined_model_forward.1} parent=1 // pred_fallthru
      _
    // Predicated region
    $region10: #{combined_model_forward.1} parent=1 // pred_check
      _
    $region11: #{combined_model_forward.1} parent=1 // pred_check_branch
      %39 = sbr.rel (0) target = $region13
    $region12: #{combined_model_forward.1} parent=1 // pred_region
      %41 = vsyncadd [#allocation6], 0
      %s42 = sshll.u32 %s2, 4
      %s43 = int_to_ptr.hbm [resolvable:$true] %s42
      %s44 = sshll.u32 [#allocation7], 4
      %s45 = int_to_ptr.vmem [resolvable:$true] %s44
      %50 = dma.hbm_to_vmem [thread:$0]  %s43, 256, %s45, [#allocation6], 128, 128, 8
    $region13: #{combined_model_forward.1} parent=1 // pred_fallthru
      _
    // Predicated region
    $region14: #{combined_model_forward.1} parent=1 // pred_check
      _
    $region15: #{combined_model_forward.1} parent=1 // pred_check_branch
      %52 = sbr.rel (0) target = $region17
    $region16: #{combined_model_forward.1} parent=1 // pred_region
      %54 = vsyncadd [#allocation9], 0
      %s55 = sshll.u32 %s3, 4
      %s56 = int_to_ptr.hbm [resolvable:$true] %s55
      %s57 = sshll.u32 [#allocation8], 4
      %s58 = int_to_ptr.vmem [resolvable:$true] %s57
      %63 = dma.hbm_to_vmem [thread:$0]  %s56, 256, %s58, [#allocation9], 128, 128, 8
    $region17: #{combined_model_forward.1} parent=1 // pred_fallthru
      _
    // Predicated region
    $region18: #{combined_model_forward.1} parent=1 // pred_check
      _
    $region19: #{combined_model_forward.1} parent=1 // pred_check_branch
      %65 = sbr.rel (0) target = $region21
    $region20: #{combined_model_forward.1} parent=1 // pred_region
      _
    $region21: #{combined_model_forward.1} parent=1 // pred_fallthru
      _
    // Predicated region
    $region22: #{combined_model_forward.1} parent=1 // pred_check
      _
    $region23: #{combined_model_forward.1} parent=1 // pred_check_branch
      %67 = sbr.rel (0) target = $region25
    $region24: #{combined_model_forward.1} parent=1 // pred_region
      %69 = vsyncadd [#allocation9], 0
      %s70 = sshll.u32 %s5, 4
      %s71 = int_to_ptr.hbm [resolvable:$true] %s70
      %s72 = sshll.u32 [#allocation10], 4
      %s73 = int_to_ptr.vmem [resolvable:$true] %s72
      %78 = dma.hbm_to_vmem [thread:$0]  %s71, 256, %s73, [#allocation9], 128, 128, 8
    $region25: #{combined_model_forward.1} parent=1 // pred_fallthru
      _
    // Predicated region
    $region26: #{combined_model_forward.1} parent=1 // pred_check
      _
    $region27: #{combined_model_forward.1} parent=1 // pred_check_branch
      %80 = sbr.rel (0) target = $region29
    $region28: #{combined_model_forward.1} parent=1 // pred_region
      _
    $region29: #{combined_model_forward.1} parent=1 // pred_fallthru
      _
    // Predicated region
    $region30: #{combined_model_forward.1} parent=1 // pred_check
      _
    $region31: #{combined_model_forward.1} parent=1 // pred_check_branch
      %82 = sbr.rel (0) target = $region33
    $region32: #{combined_model_forward.1} parent=1 // pred_region
      %84 = dma.done [#allocation3], 32
    $region33: #{combined_model_forward.1} parent=1 // pred_fallthru
      _
    // Predicated region
    $region34: #{combined_model_forward.1} parent=1 // pred_check
      _
    $region35: #{combined_model_forward.1} parent=1 // pred_check_branch
      %86 = sbr.rel (0) target = $region37
    $region36: #{combined_model_forward.1} parent=1 // pred_region
      %88 = dma.done [#allocation6], 32
    $region37: #{combined_model_forward.1} parent=1 // pred_fallthru
      _
    // Predicated region
    $region38: #{combined_model_forward.1} parent=1 // pred_check
      _
    $region39: #{combined_model_forward.1} parent=1 // pred_check_branch
      %90 = sbr.rel (0) target = $region41
    $region40: #{combined_model_forward.1} parent=1 // pred_region
      %92 = dma.done [#allocation6], 256
    $region41: #{combined_model_forward.1} parent=1 // pred_fallthru
      _
    // Predicated region
    $region42: #{combined_model_forward.1} parent=1 // pred_check
      _
    $region43: #{combined_model_forward.1} parent=1 // pred_check_branch
      %94 = sbr.rel (0) target = $region45
    $region44: #{combined_model_forward.1} parent=1 // pred_region
      %96 = dma.done [#allocation9], 256
    $region45: #{combined_model_forward.1} parent=1 // pred_fallthru
      _
    // Predicated region
    $region46: #{combined_model_forward.1} parent=1 // pred_check
      _
    $region47: #{combined_model_forward.1} parent=1 // pred_check_branch
      %98 = sbr.rel (0) target = $region49
    $region48: #{combined_model_forward.1} parent=1 // pred_region
      %100 = dma.done [#allocation9], 256
    $region49: #{combined_model_forward.1} parent=1 // pred_fallthru
      _
    %v101 = vld [vmem:[#allocation2] sm:$0x3]
    %v102 = vld [vmem:[#allocation7] sm:$0xff]
    %v103 = vld [vmem:[#allocation7 + $0x8] sm:$0x1f]
    %v104 = vld [vmem:[#allocation5] sm:$0x3]
    %v105 = vld [vmem:[#allocation8] sm:$0xff]
    %v106 = vld [vmem:[#allocation8 + $0x8] sm:$0x1f]
    %vm107 = vcmask 105472
    %v109 = vsel %vm107, %v104, 0
    %vm111 = vcmask 1044480
    %v113 = vsel %vm111, %v106, 0
    %115 = vmatpush.msra.mxu0 0.0
    %116 = vmatpush.msra.mxu0 0.0
    %117 = vmatpush.msra.mxu0 0.0
    %118 = vmatpush.msra.mxu0 0.0
    %119 = vmatpush.msra.mxu0 0.0
    %120 = vmatpush.msra.mxu0 0.0
    %121 = vmatpush.msra.mxu0 0.0
    %122 = vmatpush.msra.mxu0 0.0
    %123 = vmatpush.msra.mxu0 0.0
    %124 = vmatpush.msra.mxu0 0.0
    %125 = vmatpush.msra.mxu0 0.0
    %126 = vmatpush.msra.mxu0 0.0
    %127 = vmatpush.msra.mxu0 0.0
    %128 = vmatpush.msra.mxu0 0.0
    %129 = vmatpush.msra.mxu0 %v113
    %130 = vmatpush.msra.mxu0 %v105
    %131 = vmatmul.f32.gmra.mxu0 %v109
    %v132 = vpop.f32.mrf.mxu0
    %v133 = vadd.f32 0.0, %v132
    %134 = vdwg.mxu0
    %v136 = vsel %vm107, %v101, 0
    %v139 = vsel %vm111, %v103, 0
    %141 = vmatpush.msra.mxu0 0.0
    %142 = vmatpush.msra.mxu0 0.0
    %143 = vmatpush.msra.mxu0 0.0
    %144 = vmatpush.msra.mxu0 0.0
    %145 = vmatpush.msra.mxu0 0.0
    %146 = vmatpush.msra.mxu0 0.0
    %147 = vmatpush.msra.mxu0 0.0
    %148 = vmatpush.msra.mxu0 0.0
    %149 = vmatpush.msra.mxu0 0.0
    %150 = vmatpush.msra.mxu0 0.0
    %151 = vmatpush.msra.mxu0 0.0
    %152 = vmatpush.msra.mxu0 0.0
    %153 = vmatpush.msra.mxu0 0.0
    %154 = vmatpush.msra.mxu0 0.0
    %155 = vmatpush.msra.mxu0 %v139
    %156 = vmatpush.msra.mxu0 %v102
    %157 = vmatmul.f32.gmra.mxu0 %v136
    %v158 = vpop.f32.mrf.mxu0
    %v159 = vadd.f32 %v133, %v158
    %160 = vdwg.mxu0
    %v161 = vld [vmem:[%s4] sm:$0x1]
    %v163 = vperm.slane %v161, 0
    %v165 = vadd.f32 %v159, %v163
    %v166 = vmax.f32 %v165, 0.0
    %v167 = vld [vmem:[#allocation10] sm:$0xff]
    %v168 = vld [vmem:[#allocation10 + $0x8] sm:$0xff]
    %v169 = vld [vmem:[%s6] sm:$0x1]
    %v171 = vperm.slane %v169, 0
    %vm173 = vcmask 130048
    %v175 = vsel %vm173, %v166, 0
    %177 = vmatpush.msra.mxu0 0.0
    %178 = vmatpush.msra.mxu0 0.0
    %179 = vmatpush.msra.mxu0 0.0
    %180 = vmatpush.msra.mxu0 0.0
    %181 = vmatpush.msra.mxu0 0.0
    %182 = vmatpush.msra.mxu0 0.0
    %183 = vmatpush.msra.mxu0 0.0
    %184 = vmatpush.msra.mxu0 0.0
    %185 = vmatpush.msra.mxu0 0.0
    %186 = vmatpush.msra.mxu0 0.0
    %187 = vmatpush.msra.mxu0 0.0
    %188 = vmatpush.msra.mxu0 0.0
    %189 = vmatpush.msra.mxu0 0.0
    %190 = vmatpush.msra.mxu0 0.0
    %191 = vmatpush.msra.mxu0 %v168
    %192 = vmatpush.msra.mxu0 %v167
    %193 = vmatmul.f32.gmra.mxu0 %v175
    %v194 = vpop.f32.mrf.mxu0
    %v195 = vadd.f32 %v171, %v194
    %196 = vdwg.mxu0
    %vm197 = vcmask 99328
    %v198 = vsel %vm197, %v195, -inf
    %199 = vmax.xlane.f32.xlu0 %v198
    %v200 = vpop.xlane.xlu0 %199
    %v201 = vsub.f32 %v195, %v200
    %v202 = vmul.f32 %v201, 1.442695
    %v203 = vpow.pop %v202
    %v204 = vsel %vm197, %v203, 0.0
    %205 = vadd.xlane.f32.xlu0 %v204
    %v206 = vpop.xlane.xlu0 %205
    %v207 = vrcp.pop %v206
    %v208 = vmul.f32 %v206, %v207
    %v209 = vsub.f32 1.0, %v208
    %v210 = vmul.f32 %v207, %v209
    %v211 = vadd.f32 %v207, %v210
    %vm212 = vweird.f32 %v206
    %vm213 = vweird.f32 %v207
    %vm214 = vmor %vm212, %vm213
    %v215 = vsel %vm214, %v207, %v211
    %v216 = vand.u32 2147483647, %v206
    %vm217 = vcmp.eq.f32.partialorder %v216, 8.507059e+37
    %v218 = vand.u32 %v206, 2147483648
    %v219 = vor.u32 1.1754944e-38, %v218
    %v220 = vsel %vm217, %v219, %v215
    %v221 = vmul.f32 %v203, %v220
    %222 = vst.msk [vmem:[#allocation11] sm:$0x3] %vm197, %v221
    // Predicated region
    $region50: #{combined_model_forward.1} parent=1 // pred_check
      _
    $region51: #{combined_model_forward.1} parent=1 // pred_check_branch
      %224 = sbr.rel (0) target = $region53
    $region52: #{combined_model_forward.1} parent=1 // pred_region
      %226 = vsyncadd [#allocation4], 0
      %s228 = sshll.u32 [#allocation11], 4
      %s229 = int_to_ptr.vmem [resolvable:$true] %s228
      %s230 = sshll.u32 %s7, 4
      %s231 = int_to_ptr.hbm [resolvable:$true] %s230
      %233 = dma.vmem_to_hbm [thread:$0]  %s229, 32, %s231, [#allocation4]
    $region53: #{combined_model_forward.1} parent=1 // pred_fallthru
      _
    // Predicated region
    $region54: #{combined_model_forward.1} parent=1 // pred_check
      _
    $region55: #{combined_model_forward.1} parent=1 // pred_check_branch
      %235 = sbr.rel (0) target = $region57
    $region56: #{combined_model_forward.1} parent=1 // pred_region
      %237 = dma.done [#allocation4], 32
    $region57: #{combined_model_forward.1} parent=1 // pred_fallthru
      _
    %238 = vsyncpa [#allocation3], 1
    %239 = vsyncpa [#allocation6], 1
    %240 = vsyncpa [#allocation9], 1
    %241 = vsyncpa [#allocation4], 1

</llo_original>
